<compile_context>
chip_gen: v7x
topology: tpu7x:2x2x1
jax: 0.10.0
libtpu: 0.0.40
codegen_flags: <defaults>
</compile_context>

<pallas_src>
import numpy as np
import jax
import jax.numpy as jnp
from jax.experimental import pallas as pl
from jax.experimental.pallas import tpu as pltpu

_LANE = 128


def _round_up(v: int, m: int) -> int:
    return (v + m - 1) // m * m


def _plan_tiles(n: int, c: int, hw: int, block_bytes_budget: int):
    """Pick the lane tile: multiple of 128 (or the full extent) within budget."""
    cap = max(_LANE, (block_bytes_budget // (c * 4)) // _LANE * _LANE)
    n_tiles = pl.cdiv(hw, cap)
    # v7x has 2 TensorCores and shards "parallel" grid axes across them;
    # make sure there are at least 2 grid steps when the spatial axis allows.
    if n * n_tiles < 2 and hw >= 2 * _LANE:
        n_tiles = 2
    if n_tiles <= 1:
        # Single full-extent block: equal to the array dim, exempt from the
        # 128-multiple rule, and no partial-block tail at all.
        return hw, 1
    tile = min(_round_up(pl.cdiv(hw, n_tiles), _LANE), (hw // _LANE) * _LANE)
    return tile, pl.cdiv(hw, tile)


def make_lrn(k: float, win: int, alpha: float, beta: float,
             block_bytes_budget: int = 4 << 20):
    """Returns a callable lrn(x) with x in NCHW layout."""
    assert win % 2 == 1, "shape-preserving LRN (as in the PyTorch module) needs odd n"
    pad = (win - 1) // 2

    def lrn_kernel(band_ref, x_ref, o_ref):
        # band_ref: (C, C) resident window matrix; x_ref block: (1, C, TILE)
        x = x_ref[0]                                  # (C, T)
        xf = x.astype(jnp.float32)
        xsq = xf * xf

        # Cross-channel windowed sum on the (otherwise idle) MXU.
        # alpha * sum << k for typical LRN hyperparameters, so MXU rounding of
        # x^2 is far below the output tolerance.
        s = jnp.dot(band_ref[...], xsq, preferred_element_type=jnp.float32)
        d = s * jnp.float32(alpha) + jnp.float32(k)

        # out = x * d^{-beta}   (avoid pow + divide)
        if abs(beta - 0.75) < 1e-12:
            t = jax.lax.rsqrt(d)          # d^{-1/2}
            inv = t * jnp.sqrt(t)         # d^{-1/2} * d^{-1/4} = d^{-3/4}
        else:
            inv = jnp.exp(jnp.float32(-beta) * jnp.log(d))

        o_ref[0] = (xf * inv).astype(o_ref.dtype)

    def lrn(x):
        n, c, h, w = x.shape
        hw = h * w
        tile, n_tiles = _plan_tiles(n, c, hw, block_bytes_budget)
        grid = (n, n_tiles)

        # Banded ones matrix, built once on the host: band[c, c'] = 1 iff c' is
        # inside c's LRN window.  Constant index_map below => DMA'd once and
        # resident in VMEM for the whole grid.
        off = np.arange(c)[None, :] - np.arange(c)[:, None]
        band = jnp.asarray(((off >= -pad) & (off <= win - 1 - pad)).astype(np.float32))

        x2d = x.reshape(n, c, hw)   # metadata-only for contiguous NCHW

        elem_bytes = jnp.dtype(x.dtype).itemsize
        cost = pl.CostEstimate(
            flops=int(n * c * hw * (2 * c + 6)),
            transcendentals=int(2 * n * c * hw),
            bytes_accessed=int(2 * n * c * hw * elem_bytes + c * c * 4),
        )

        out = pl.pallas_call(
            lrn_kernel,
            out_shape=jax.ShapeDtypeStruct((n, c, hw), x.dtype),
            grid_spec=pltpu.PrefetchScalarGridSpec(
                num_scalar_prefetch=0,
                grid=grid,
                in_specs=[
                    pl.BlockSpec((c, c), lambda i, j: (0, 0)),           # band
                    pl.BlockSpec((1, c, tile), lambda i, j: (i, 0, j)),  # x
                ],
                out_specs=pl.BlockSpec((1, c, tile), lambda i, j: (i, 0, j)),
            ),
            compiler_params=pltpu.CompilerParams(
                dimension_semantics=("parallel", "parallel"),
                vmem_limit_bytes=32 * 1024 * 1024,
            ),
            cost_estimate=cost,
        )(band, x2d)

        return out.reshape(n, c, h, w)

    return jax.jit(lrn)


def lrn_reference(x, k, win, alpha, beta):
    """Pure-JAX reference matching the PyTorch module (pow then divide)."""
    pad = (win - 1) // 2
    xsq = (x.astype(jnp.float32)) ** 2
    xp = jnp.pad(xsq, ((0, 0), (pad, win - 1 - pad), (0, 0), (0, 0)))
    c = x.shape[1]
    denom = sum(xp[:, j:j + c] for j in range(win))
    denom = (denom * alpha + k) ** beta
    return (x.astype(jnp.float32) / denom).astype(x.dtype)


if __name__ == "__main__":
    # LRN hyperparameters (classic AlexNet-style values), deterministic inputs.
    K, WIN, ALPHA, BETA = 2.0, 5, 1e-4, 0.75
    lrn = make_lrn(K, WIN, ALPHA, BETA)

    key = jax.random.PRNGKey(0)

    # Test 1: spatial dim a multiple of 128 (16*16 = 256), single block per image.
    x = jax.random.normal(key, (2, 8, 16, 16), dtype=jnp.float32)
    out = jax.block_until_ready(lrn(x))
    ref = lrn_reference(x, K, WIN, ALPHA, BETA)
    assert out.shape == x.shape and out.dtype == x.dtype
    assert jnp.allclose(out, ref, atol=2e-5, rtol=2e-5)

    # Test 2: non-128-multiple spatial (9*9 = 81): full-extent lane block, no pad.
    x2 = jax.random.normal(jax.random.PRNGKey(0), (2, 8, 9, 9), dtype=jnp.float32)
    out2 = jax.block_until_ready(lrn(x2))
    ref2 = lrn_reference(x2, K, WIN, ALPHA, BETA)
    assert out2.shape == x2.shape and out2.dtype == x2.dtype
    assert jnp.allclose(out2, ref2, atol=2e-5, rtol=2e-5)

    # Test 3: force a small tile budget so the grid has multiple lane tiles and a
    # masked partial last block (exercises the no-wrapper-pad path).
    lrn_tiled = make_lrn(K, WIN, ALPHA, BETA, block_bytes_budget=4096)
    x3 = jax.random.normal(jax.random.PRNGKey(0), (1, 8, 20, 20), dtype=jnp.float32)
    out3 = jax.block_until_ready(lrn_tiled(x3))
    ref3 = lrn_reference(x3, K, WIN, ALPHA, BETA)
    assert out3.shape == x3.shape and out3.dtype == x3.dtype
    assert jnp.allclose(out3, ref3, atol=2e-5, rtol=2e-5)

    print("KERNEL_OK")
</pallas_src>

<mosaic_0001>
module attributes {stable_mosaic.version = 11 : i64} {
  func.func @lrn_kernel(%arg0: i32, %arg1: i32, %arg2: memref<8x8xf32, #tpu.memory_space<vmem>>, %arg3: memref<1x8x256xf32, #tpu.memory_space<vmem>>, %arg4: memref<1x8x256xf32, #tpu.memory_space<vmem>>) attributes {dimension_semantics = [#tpu.dimension_semantics<parallel>, #tpu.dimension_semantics<parallel>], iteration_bounds = array<i64: 2, 1>, scalar_prefetch = 0 : i64, scratch_operands = 0 : i64, tpu.core_type = #tpu.core_type<tc>, window_params = [{pipeline_mode = #tpu.pipeline_mode<synchronous>, transform_indices = @transform_0, window_bounds = array<i64: 8, 8>}, {transform_indices = @transform_1, window_bounds = array<i64: 1, 8, 256>}, {transform_indices = @transform_2, window_bounds = array<i64: 1, 8, 256>}]} {
    %c0 = arith.constant 0 : index
    %c0_0 = arith.constant 0 : index
    %c0_1 = arith.constant 0 : index
    %0 = vector.load %arg3[%c0, %c0_0, %c0_1] : memref<1x8x256xf32, #tpu.memory_space<vmem>>, vector<1x8x256xf32>
    %1 = vector.shape_cast %0 : vector<1x8x256xf32> to vector<8x256xf32>
    %2 = arith.mulf %1, %1 : vector<8x256xf32>
    %c0_2 = arith.constant 0 : index
    %c0_3 = arith.constant 0 : index
    %3 = vector.load %arg2[%c0_2, %c0_3] : memref<8x8xf32, #tpu.memory_space<vmem>>, vector<8x8xf32>
    %cst = arith.constant dense<0.000000e+00> : vector<8x256xf32>
    %4 = tpu.matmul %3, %2, %cst {dimension_numbers = #tpu.dot_dimension_numbers<[1], [0], [0], [1], [0, 0, 1, 1], [], []>} : vector<8x8xf32>, vector<8x256xf32>, vector<8x256xf32> -> vector<8x256xf32>
    %cst_4 = arith.constant 9.99999974E-5 : f32
    %5 = vector.broadcast %cst_4 : f32 to vector<8x256xf32>
    %6 = arith.mulf %4, %5 : vector<8x256xf32>
    %cst_5 = arith.constant 2.000000e+00 : f32
    %7 = vector.broadcast %cst_5 : f32 to vector<8x256xf32>
    %8 = arith.addf %6, %7 : vector<8x256xf32>
    %9 = math.rsqrt %8 : vector<8x256xf32>
    %10 = math.sqrt %9 : vector<8x256xf32>
    %11 = arith.mulf %9, %10 : vector<8x256xf32>
    %12 = arith.mulf %1, %11 : vector<8x256xf32>
    %c0_6 = arith.constant 0 : index
    %c0_7 = arith.constant 0 : index
    %c0_8 = arith.constant 0 : index
    %13 = vector.load %arg4[%c0_6, %c0_7, %c0_8] : memref<1x8x256xf32, #tpu.memory_space<vmem>>, vector<1x8x256xf32>
    %14 = vector.shape_cast %13 : vector<1x8x256xf32> to vector<8x256xf32>
    %15 = vector.shape_cast %12 : vector<8x256xf32> to vector<1x8x256xf32>
    tpu.vector_store %arg4[%c0_6, %c0_7, %c0_8], %15 {strides = array<i32>} : memref<1x8x256xf32, #tpu.memory_space<vmem>>, vector<1x8x256xf32>,
    return
  }
  func.func @transform_0(%arg0: i32, %arg1: i32) -> (i32, i32) {
    %c0_i32 = arith.constant 0 : i32
    %c0_i32_0 = arith.constant 0 : i32
    %c0_i32_1 = arith.constant 0 : i32
    return %c0_i32, %c0_i32_0 : i32, i32
  }
  func.func @transform_1(%arg0: i32, %arg1: i32) -> (i32, i32, i32) {
    %c0_i32 = arith.constant 0 : i32
    %c0_i32_0 = arith.constant 0 : i32
    return %arg0, %c0_i32, %arg1 : i32, i32, i32
  }
  func.func @transform_2(%arg0: i32, %arg1: i32) -> (i32, i32, i32) {
    %c0_i32 = arith.constant 0 : i32
    %c0_i32_0 = arith.constant 0 : i32
    return %arg0, %c0_i32, %arg1 : i32, i32, i32
  }
}

</mosaic_0001>

<llo_original>
// kernel: lrn.1
$region0: #{lrn.1}
  #allocation0 [shape = 'u32[]', space=smem, size = 0x4, offset = 0x4, fixed_abs, tag = 'smem constant byte address 0x4 - core index']
  #allocation1 [shape = 'u32[144,128]{1,0:T(1,128)}', space=vmem, size = 0x12000, scoped, tag = 'internal scratch']
  %s0 = inlined_call_operand.vmem [shape: f32[8,8], index: 0, kind: input, shape index: {}]
  %s1 = inlined_call_operand.vmem [shape: f32[2,8,256], index: 1, kind: input, shape index: {}]
  %s2 = inlined_call_operand.vmem [shape: f32[2,8,256], index: 2, kind: output, shape index: {}]
  %s3 = sld [smem:[#allocation0]]
  $region41: #{lrn.1} parent=0
    _
  %s5 = ssub.s32 1, %s3
  %s6 = scalar_select 0, %s5, %s3
  loop: start=0, step=1, limit=4
  $region2: #{lrn.1} parent=0 // loop_pre_header
    _
  $region3: #{lrn.1} parent=0 // loop_header
    %s8 = sphi 0, %s12
    %p9 = scmp.ge.s32.totalorder %s8, 4
    %s15 = sphi 0, %s27
    %s16 = sphi 0, %s23
    %s17 = sphi 0, %s15
    %s18 = sphi 0, %s16
    %s19 = sphi 0, %s17
    %s20 = sphi 0, %s18
    %s28 = sphi 0, %s28
    %s30 = sphi 0, %s28
    %s31 = sphi 0, %s30
    %s45 = sphi 0, %s31
    %s53 = sphi 0, %s55
    %s56 = sphi 0, %s53
    %s57 = sphi 0, %s56
    %s73 = sphi 0, %s57
    %s81 = sphi 0, %s83
    %s84 = sphi 0, %s81
    %s85 = sphi 0, %s84
    %s101 = sphi 0, %s85
  $region4: #{lrn.1} parent=0 // loop_header_branch
    %11 = sbr.rel (%p9) target = $region8
  $region5: #{lrn.1} parent=0 // loop_body
    %s13 = ssub.s32 %s8, 1
    %s14 = ssub.s32 %s8, 2
    %s21 = sadd.s32 1, %s16
    %p22 = scmp.ge.s32.totalorder %s21, 1
    %s23 = scalar_select %p22, 0, %s21
    %s24 = sadd.s32 1, %s15
    %s25 = scalar_select %p22, %s24, %s15
    %p26 = scmp.ge.s32.totalorder %s25, 2
    %s27 = scalar_select %p26, 0, %s25
    %s29 = sadd.s32 %s28, 1
    %p32 = scmp.eq.s32.totalorder %s8, 1
    %p33 = scmp.ne.s32.totalorder %s28, %s30
    %p34 = scmp.eq.s32.totalorder %s8, 0
    %p35 = por %p33, %p34
    %p36 = scmp.ne.s32.totalorder %s28, %s30
    %p37 = scmp.eq.s32.totalorder %s13, 1
    %p38 = por %p36, %p37
    %p39 = scmp.ne.s32.totalorder %s30, %s31
    %p40 = scmp.eq.s32.totalorder %s13, 0
    %p41 = por %p39, %p40
    %p42 = scmp.ne.s32.totalorder %s30, %s31
    %p43 = scmp.eq.s32.totalorder %s14, 1
    %p44 = por %p42, %p43
    %p46 = scmp.ne.s32.totalorder %s31, %s45
    %p47 = scmp.eq.s32.totalorder %s14, 0
    %p48 = por %p46, %p47
    %s49 = ssub.s32 %s15, %s27
    %s50 = ssub.s32 %s16, %s23
    %s51 = sor.u32 %s49, %s50
    %p52 = scmp.eq.s32.totalorder %s51, 0
    %s54 = sadd.s32 %s53, 1
    %s55 = scalar_select %p52, %s53, %s54
    %p58 = pneg %p52
    %p59 = scmp.eq.s32.totalorder %s8, 1
    %p60 = por %p58, %p59
    %p61 = scmp.ne.s32.totalorder %s53, %s56
    %p62 = scmp.eq.s32.totalorder %s8, 0
    %p63 = por %p61, %p62
    %p64 = scmp.ne.s32.totalorder %s53, %s56
    %p65 = scmp.eq.s32.totalorder %s13, 1
    %p66 = por %p64, %p65
    %p67 = scmp.ne.s32.totalorder %s56, %s57
    %p68 = scmp.eq.s32.totalorder %s13, 0
    %p69 = por %p67, %p68
    %p70 = scmp.ne.s32.totalorder %s56, %s57
    %p71 = scmp.eq.s32.totalorder %s14, 1
    %p72 = por %p70, %p71
    %p74 = scmp.ne.s32.totalorder %s57, %s73
    %p75 = scmp.eq.s32.totalorder %s14, 0
    %p76 = por %p74, %p75
    %s77 = ssub.s32 %s15, %s27
    %s78 = ssub.s32 %s16, %s23
    %s79 = sor.u32 %s77, %s78
    %p80 = scmp.eq.s32.totalorder %s79, 0
    %s82 = sadd.s32 %s81, 1
    %s83 = scalar_select %p80, %s81, %s82
    %p86 = pneg %p80
    %p87 = scmp.eq.s32.totalorder %s8, 1
    %p88 = por %p86, %p87
    %p89 = scmp.ne.s32.totalorder %s81, %s84
    %p90 = scmp.eq.s32.totalorder %s8, 0
    %p91 = por %p89, %p90
    %p92 = scmp.ne.s32.totalorder %s81, %s84
    %p93 = scmp.eq.s32.totalorder %s13, 1
    %p94 = por %p92, %p93
    %p95 = scmp.ne.s32.totalorder %s84, %s85
    %p96 = scmp.eq.s32.totalorder %s13, 0
    %p97 = por %p95, %p96
    %p98 = scmp.ne.s32.totalorder %s84, %s85
    %p99 = scmp.eq.s32.totalorder %s14, 1
    %p100 = por %p98, %p99
    %p102 = scmp.ne.s32.totalorder %s85, %s101
    %p103 = scmp.eq.s32.totalorder %s14, 0
    %p104 = por %p102, %p103
    %p105 = scmp.le.s32.totalorder 1, %s8
    %p106 = scmp.lt.s32.totalorder %s8, 3
    %p107 = pnand %p105, %p106
    %p108 = pneg %p107
    // Predicated region
    $region9: #{lrn.1} parent=5 // pred_check
      _
    $region10: #{lrn.1} parent=5 // pred_check_branch
      %110 = sbr.rel (%p107) target = $region12
    $region11: #{lrn.1} parent=5 // pred_region
      %s111 = ssub.s32 %s8, 1
      // Predicated region
      $region13: #{lrn.1} parent=11 // pred_check
        %p112 = pneg %p41
      $region14: #{lrn.1} parent=11 // pred_check_branch
        %114 = sbr.rel (%p112) target = $region16
      $region15: #{lrn.1} parent=11 // pred_region
        _
      $region16: #{lrn.1} parent=11 // pred_fallthru
        _
    $region12: #{lrn.1} parent=5 // pred_fallthru
      _
    %p115 = scmp.lt.s32.totalorder %s8, 2
    // Predicated region
    $region17: #{lrn.1} parent=5 // pred_check
      %p116 = pneg %p115
    $region18: #{lrn.1} parent=5 // pred_check_branch
      %118 = sbr.rel (%p116) target = $region20
    $region19: #{lrn.1} parent=5 // pred_region
      // Predicated region
      $region21: #{lrn.1} parent=19 // pred_check
        %p119 = pneg %p63
      $region22: #{lrn.1} parent=19 // pred_check_branch
        %121 = sbr.rel (%p119) target = $region24
      $region23: #{lrn.1} parent=19 // pred_region
        %s122 = smul.u32 2, %s16
        %p123 = scmp.lt.s32.totalorder %s15, 1
        %s124 = scalar_select %p123, %s15, 1
        %p125 = scmp.lt.s32.totalorder %s122, 1
        %s126 = scalar_select %p125, %s122, 1
        %s127 = smul.addr %s124, 2
        %s128 = sadd.s32 %s126, %s127
        %s129 = smul.addr %s128, 8
        %s130 = scalar_lea.vmem %s1, %s129
        %s131 = smul.u32 2, %s16
      $region24: #{lrn.1} parent=19 // pred_fallthru
        _
    $region20: #{lrn.1} parent=5 // pred_fallthru
      _
    %p132 = scmp.le.s32.totalorder 1, %s8
    %p133 = scmp.lt.s32.totalorder %s8, 3
    %p134 = pnand %p132, %p133
    %p135 = pneg %p134
    // Predicated region
    $region25: #{lrn.1} parent=5 // pred_check
      _
    $region26: #{lrn.1} parent=5 // pred_check_branch
      %137 = sbr.rel (%p134) target = $region28
    $region27: #{lrn.1} parent=5 // pred_region
      %s138 = ssub.s32 %s8, 1
      %p139 = pneg %p41
      %p140 = pneg %p38
      %s141 = smul.u32 2, %s18
      %p142 = scmp.lt.s32.totalorder %s17, 1
      %s143 = scalar_select %p142, %s17, 1
      %p144 = scmp.lt.s32.totalorder %s141, 1
      %s145 = scalar_select %p144, %s141, 1
      %s146 = smul.addr %s143, 2
      %s147 = sadd.s32 %s145, %s146
      %s148 = smul.addr %s147, 8
      %s149 = scalar_lea.vmem %s1, %s148
      %p150 = pneg %p69
      %p151 = pneg %p66
      %p152 = pneg %p97
      %p153 = pneg %p94
      %s154 = smul.u32 2, %s18
      %p155 = scmp.lt.s32.totalorder %s17, 1
      %s156 = scalar_select %p155, %s17, 1
      %p157 = scmp.lt.s32.totalorder %s154, 1
      %s158 = scalar_select %p157, %s154, 1
      %s159 = smul.addr %s156, 2
      %s160 = sadd.s32 %s158, %s159
      %s161 = smul.addr %s160, 8
      %s162 = scalar_lea.vmem %s2, %s161
      %s163 = smul.u32 2, %s18
      %p164 = scmp.lt.s32.totalorder %s17, 1
      %s165 = scalar_select %p164, %s17, 1
      %p166 = scmp.lt.s32.totalorder %s163, 1
      %s167 = scalar_select %p166, %s163, 1
      %s168 = smul.addr %s165, 2
      %s169 = sadd.s32 %s167, %s168
      %s170 = smul.addr %s169, 8
      %s171 = scalar_lea.vmem %s1, %s170
      %s172 = smul.u32 2, %s18
      %s173 = smul.u32 2, %s18
      %p174 = scmp.lt.s32.totalorder %s17, 1
      %s175 = scalar_select %p174, %s17, 1
      %p176 = scmp.lt.s32.totalorder %s173, 1
      %s177 = scalar_select %p176, %s173, 1
      %s178 = smul.addr %s175, 2
      %s179 = sadd.s32 %s177, %s178
      %s180 = smul.addr %s179, 8
      %s181 = scalar_lea.vmem %s2, %s180
      %s182 = smul.u32 2, %s18
      %v183 = vld [vmem:[%s171] sm:$0xff]
      %v184 = vld [vmem:[%s171 + $0x8] sm:$0xff]
      %v185 = vmul.f32 %v183, %v183
      %v186 = vmul.f32 %v184, %v184
      %v187 = vld [vmem:[%s0] sm:$0xff]
      %vm188 = vcmask 64512
      %v190 = vsel %vm188, %v187, 0
      %192 = vmatprep.subr.mxu0 %v186
      %193 = vmatpush1.msra.mxu0 %v185
      %194 = vmatprep.subr.mxu0 0.0
      %195 = vmatpush1.msra.mxu0 0.0
      %196 = vmatprep.subr.mxu0 0.0
      %197 = vmatpush1.msra.mxu0 0.0
      %198 = vmatprep.subr.mxu0 0.0
      %199 = vmatpush1.msra.mxu0 0.0
      %200 = vmatprep.subr.mxu0 0.0
      %201 = vmatpush1.msra.mxu0 0.0
      %202 = vmatprep.subr.mxu0 0.0
      %203 = vmatpush1.msra.mxu0 0.0
      %204 = vmatprep.subr.mxu0 0.0
      %205 = vmatpush1.msra.mxu0 0.0
      %206 = vmatprep.subr.mxu0 0.0
      %207 = vmatpush1.msra.mxu0 0.0
      %208 = vmatprep.subr.mxu0 0.0
      %209 = vmatpush1.msra.mxu0 0.0
      %210 = vmatprep.subr.mxu0 0.0
      %211 = vmatpush1.msra.mxu0 0.0
      %212 = vmatprep.subr.mxu0 0.0
      %213 = vmatpush1.msra.mxu0 0.0
      %214 = vmatprep.subr.mxu0 0.0
      %215 = vmatpush1.msra.mxu0 0.0
      %216 = vmatprep.subr.mxu0 0.0
      %217 = vmatpush1.msra.mxu0 0.0
      %218 = vmatprep.subr.mxu0 0.0
      %219 = vmatpush1.msra.mxu0 0.0
      %220 = vmatprep.subr.mxu0 0.0
      %221 = vmatpush1.msra.mxu0 0.0
      %222 = vmatprep.subr.mxu0 0.0
      %223 = vmatpush1.msra.mxu0 0.0
      %224 = vmatprep.subr.mxu0 0.0
      %225 = vmatpush1.msra.mxu0 0.0
      %226 = vmatprep.subr.mxu0 0.0
      %227 = vmatpush1.msra.mxu0 0.0
      %228 = vmatprep.subr.mxu0 0.0
      %229 = vmatpush1.msra.mxu0 0.0
      %230 = vmatprep.subr.mxu0 0.0
      %231 = vmatpush1.msra.mxu0 0.0
      %232 = vmatprep.subr.mxu0 0.0
      %233 = vmatpush1.msra.mxu0 0.0
      %234 = vmatprep.subr.mxu0 0.0
      %235 = vmatpush1.msra.mxu0 0.0
      %236 = vmatprep.subr.mxu0 0.0
      %237 = vmatpush1.msra.mxu0 0.0
      %238 = vmatprep.subr.mxu0 0.0
      %239 = vmatpush1.msra.mxu0 0.0
      %240 = vmatprep.subr.mxu0 0.0
      %241 = vmatpush1.msra.mxu0 0.0
      %242 = vmatprep.subr.mxu0 0.0
      %243 = vmatpush1.msra.mxu0 0.0
      %244 = vmatprep.subr.mxu0 0.0
      %245 = vmatpush1.msra.mxu0 0.0
      %246 = vmatprep.subr.mxu0 0.0
      %247 = vmatpush1.msra.mxu0 0.0
      %248 = vmatprep.subr.mxu0 0.0
      %249 = vmatpush1.msra.mxu0 0.0
      %250 = vmatprep.subr.mxu0 0.0
      %251 = vmatpush1.msra.mxu0 0.0
      %252 = vmatprep.subr.mxu0 0.0
      %253 = vmatpush1.msra.mxu0 0.0
      %254 = vmatprep.subr.mxu0 0.0
      %255 = vmatpush1.msra.mxu0 0.0
      %256 = vmatprep.mubr.f32.mxu0 0.0
      %257 = vmatmul.mubr.f32.gmra.mrb[0].mxu0 %v190
      %v258 = vpop.f32.mrb[0].mxu0
      %v259 = vadd.f32 0.0, %v258
      %v260 = vpop.f32.mrb[0].mxu0
      %v261 = vadd.f32 0.0, %v260
      %262 = vdwg.mxu0
      %v263 = vmul.f32 %v259, 0.0001
      %v264 = vmul.f32 %v261, 0.0001
      %v265 = vadd.f32 %v263, 2.0
      %v266 = vadd.f32 %v264, 2.0
      %v267 = vrsqrt.pop %v265
      %v268 = vrsqrt.pop %v266
      %v269 = vrsqrt.pop %v267
      %v270 = vmul.f32 %v267, %v269
      %vm271 = vcmp.eq.f32.partialorder %v267, inf
      %v272 = vsel %vm271, %v267, %v270
      %vm273 = vcmp.eq.f32.partialorder %v267, 0.0
      %v274 = vand.u32 %v267, 2147483648
      %v275 = vsel %vm273, %v274, %v272
      %v276 = vrsqrt.pop %v268
      %v277 = vmul.f32 %v268, %v276
      %vm278 = vcmp.eq.f32.partialorder %v268, inf
      %v279 = vsel %vm278, %v268, %v277
      %vm280 = vcmp.eq.f32.partialorder %v268, 0.0
      %v281 = vand.u32 %v268, 2147483648
      %v282 = vsel %vm280, %v281, %v279
      %v283 = vmul.f32 %v267, %v275
      %v284 = vmul.f32 %v268, %v282
      %v285 = vmul.f32 %v183, %v283
      %v286 = vmul.f32 %v184, %v284
      %287 = vst [vmem:[%s181] sm:$0xff] %v285
      %288 = vst [vmem:[%s181 + $0x8] sm:$0xff] %v286
      %s289 = smul.u32 2, %s18
      %p290 = scmp.lt.s32.totalorder %s17, 1
      %s291 = scalar_select %p290, %s17, 1
      %p292 = scmp.lt.s32.totalorder %s289, 1
      %s293 = scalar_select %p292, %s289, 1
      %s294 = smul.addr %s291, 2
      %s295 = sadd.s32 %s293, %s294
      %s296 = smul.addr %s295, 8
      %s297 = scalar_lea.vmem %s2, %s296
      // Predicated region
      $region29: #{lrn.1} parent=27 // pred_check
        %p298 = pneg %p94
      $region30: #{lrn.1} parent=27 // pred_check_branch
        %300 = sbr.rel (%p298) target = $region32
      $region31: #{lrn.1} parent=27 // pred_region
        %s301 = smul.u32 2, %s18
      $region32: #{lrn.1} parent=27 // pred_fallthru
        _
    $region28: #{lrn.1} parent=5 // pred_fallthru
      _
    %p302 = scmp.le.s32.totalorder 2, %s8
    // Predicated region
    $region33: #{lrn.1} parent=5 // pred_check
      %p303 = pneg %p302
    $region34: #{lrn.1} parent=5 // pred_check_branch
      %305 = sbr.rel (%p303) target = $region36
    $region35: #{lrn.1} parent=5 // pred_region
      %s306 = ssub.s32 %s8, 2
      // Predicated region
      $region37: #{lrn.1} parent=35 // pred_check
        %p307 = pneg %p100
      $region38: #{lrn.1} parent=35 // pred_check_branch
        %309 = sbr.rel (%p307) target = $region40
      $region39: #{lrn.1} parent=35 // pred_region
        %s310 = smul.u32 2, %s20
        %p311 = scmp.lt.s32.totalorder %s19, 1
        %s312 = scalar_select %p311, %s19, 1
        %p313 = scmp.lt.s32.totalorder %s310, 1
        %s314 = scalar_select %p313, %s310, 1
        %s315 = smul.addr %s312, 2
        %s316 = sadd.s32 %s314, %s315
        %s317 = smul.addr %s316, 8
        %s318 = scalar_lea.vmem %s2, %s317
      $region40: #{lrn.1} parent=35 // pred_fallthru
        _
    $region36: #{lrn.1} parent=5 // pred_fallthru
      _
  $region6: #{lrn.1} parent=0 // loop_footer
    %s12 = sadd.s32 1, %s8
  $region7: #{lrn.1} parent=0 // loop_footer_branch
    %7 = sbr.rel target = $region3
  $region8: #{lrn.1} parent=0 // loop_exit
    _

</llo_original>
